<compile_context>
chip_gen: v7x
topology: tpu7x:2x2x1
jax: 0.10.0
libtpu: 0.0.40
codegen_flags: <defaults>
</compile_context>

<pallas_src>
import functools
import math

import jax
import jax.numpy as jnp
from jax.experimental import pallas as pl
from jax.experimental.pallas import tpu as pltpu

BN_EPS = 1e-5


def _round_up(x, m):
    return ((x + m - 1) // m) * m


def linear_block_kernel(x_ref, w_ref, b_ref, o_ref, *scratch,
                        in_dim, tk, bn_eps, mask_k_tail):
    """One (N-tile, K-tile) grid step.

    x_ref:   [B, K_pad]  full input, resident across the whole grid (DMA'd once)
    w_ref:   [tn, tk]    weight tile, PyTorch [out, in] layout (edge blocks allowed)
    b_ref:   [1, tn]     bias tile
    o_ref:   [B, tn]     output tile, resident across the K axis
    scratch: optional [B, tn] f32 accumulator (only when o_ref is not f32)
    """
    acc_ref = scratch[0] if scratch else o_ref
    k = pl.program_id(1)

    # Slice the K tile out of the resident x block (start is a multiple of 128).
    kk = pl.multiple_of(k * tk, 128)
    x_tile = x_ref[:, pl.ds(kk, tk)]

    w = w_ref[...]
    if mask_k_tail:
        # Weight is streamed unpadded: the last K tile's lanes >= in_dim hold
        # unspecified data and MUST be zeroed before the contraction.
        col = kk + jax.lax.broadcasted_iota(jnp.int32, w.shape, 1)
        w = jnp.where(col < in_dim, w, jnp.zeros_like(w))

    # y_partial = x_tile @ W_tile.T : contract on in_dim of both operands
    # (no materialized transpose; runs on the MXU in the input dtype, f32 accumulate).
    part = jax.lax.dot_general(
        x_tile, w,
        dimension_numbers=(((1,), (1,)), ((), ())),
        preferred_element_type=jnp.float32)

    @pl.when(k == 0)
    def _():
        acc_ref[...] = part            # assign on first K tile (no zero+add pass)

    @pl.when(k != 0)
    def _():
        acc_ref[...] += part

    @pl.when(k == pl.num_programs(1) - 1)
    def _():
        y = acc_ref[...]
        # BatchNorm1d(affine=False): training-mode batch statistics, biased variance.
        mean = jnp.mean(y, axis=0, keepdims=True)
        var = jnp.mean(jnp.square(y - mean), axis=0, keepdims=True)
        y = (y - mean) * jax.lax.rsqrt(var + bn_eps)
        # bias add (broadcast over batch) then ReLU
        y = jnp.maximum(y + b_ref[...].astype(jnp.float32), 0.0)
        o_ref[...] = y.astype(o_ref.dtype)


def linear_block(x, weight, bias, *, tn=256, tk=512, bn_eps=BN_EPS, out_dtype=None):
    """x: [B, in_dim]; weight: [out_dim, in_dim] (PyTorch layout); bias: [out_dim].

    Pass bf16 x/weight to halve HBM traffic (epilogue math stays f32).
    out_dtype defaults to float32; a non-f32 out_dtype uses an f32 scratch accumulator.
    """
    B, in_dim = x.shape
    out_dim, in_dim_w = weight.shape
    assert in_dim_w == in_dim
    out_dtype = jnp.dtype(out_dtype) if out_dtype is not None else jnp.dtype(jnp.float32)
    if weight.dtype != x.dtype:
        weight = weight.astype(x.dtype)

    # ---- tile sizing (lane-aligned) -------------------------------------------------
    n_pad128 = _round_up(out_dim, 128)
    tn = max(128, min(_round_up(tn, 128), n_pad128))
    # Guarantee >= 2 N tiles when out_dim allows it so v7x's 2nd TensorCore gets work
    # on the "parallel" N axis (harmless on single-TC v5e/v6e).
    if n_pad128 >= 256 and pl.cdiv(n_pad128, tn) < 2:
        tn = max(128, _round_up(n_pad128 // 2, 128))
    n_tiles = pl.cdiv(n_pad128, tn)
    N_out = n_tiles * tn

    k_pad128 = _round_up(in_dim, 128)
    tk = max(128, min(_round_up(tk, 128), k_pad128))
    k_tiles = pl.cdiv(k_pad128, tk)
    K_pad = k_tiles * tk

    # ---- pad only the SMALL operands (x along K, bias along N); the large weight is
    # ---- streamed unpadded via edge blocks + in-kernel K-tail masking ----------------
    if K_pad != in_dim:
        x = jnp.pad(x, ((0, 0), (0, K_pad - in_dim)))
    bias2 = bias.reshape(1, out_dim).astype(jnp.float32)
    if N_out != out_dim:
        bias2 = jnp.pad(bias2, ((0, 0), (0, N_out - out_dim)))

    mask_k_tail = (in_dim % tk) != 0
    use_scratch = out_dtype != jnp.dtype(jnp.float32)

    kernel = functools.partial(
        linear_block_kernel, in_dim=in_dim, tk=tk, bn_eps=bn_eps,
        mask_k_tail=mask_k_tail)

    out = pl.pallas_call(
        kernel,
        out_shape=jax.ShapeDtypeStruct((B, N_out), out_dtype),
        grid=(n_tiles, k_tiles),
        in_specs=[
            # x: one full resident block, DMA'd once for the whole grid
            pl.BlockSpec((B, K_pad), lambda j, k: (0, 0)),
            # weight: PyTorch [out, in] layout, streamed exactly once, (N, K) indexed
            pl.BlockSpec((tn, tk), lambda j, k: (j, k)),
            # bias: one (1, tn) lane-dense row per N tile
            pl.BlockSpec((1, tn), lambda j, k: (0, j)),
        ],
        # output tile resident across K (accumulator pattern), lane-dense tn
        out_specs=pl.BlockSpec((B, tn), lambda j, k: (0, j)),
        scratch_shapes=([pltpu.VMEM((B, tn), jnp.float32)] if use_scratch else []),
        compiler_params=pltpu.CompilerParams(
            dimension_semantics=("parallel", "arbitrary"),
            vmem_limit_bytes=32 * 1024 * 1024),
    )(x, weight, bias2)

    if N_out != out_dim:
        out = out[:, :out_dim]
    return out


def reference(x, weight, bias):
    x = x.astype(jnp.float32)
    weight = weight.astype(jnp.float32)
    bias = bias.astype(jnp.float32)
    y = x @ weight.T
    mean = jnp.mean(y, axis=0, keepdims=True)
    var = jnp.mean((y - mean) ** 2, axis=0, keepdims=True)
    y = (y - mean) / jnp.sqrt(var + BN_EPS)
    y = y + bias.reshape(1, -1)
    return jnp.maximum(y, 0.0)


# TODO(synk): dropout (default p=0.0 -> no-op) and the alternative nonlinearities
# (smoothrelu/softplus/leaky_relu/selu/elu) of the PyTorch block are not implemented;
# the default ctor path (bn=True, relu, bias) is what this kernel reproduces.


if __name__ == "__main__":
    key = jax.random.PRNGKey(0)
    kx, kw, kb, kx2, kw2, kb2, kx3, kw3, kb3 = jax.random.split(key, 9)

    # --- Test 1: small shapes matching the module defaults (B=8, in=32, out=64) -------
    B, in_dim, out_dim = 8, 32, 64
    stdv = 1.0 / math.sqrt(in_dim)
    weight = jax.random.uniform(kw, (out_dim, in_dim), jnp.float32, -stdv, stdv)
    bias = jax.random.uniform(kb, (out_dim,), jnp.float32, -stdv, stdv)
    x = jax.random.normal(kx, (B, in_dim), jnp.float32)

    out = jax.block_until_ready(linear_block(x, weight, bias))
    ref = reference(x, weight, bias)
    assert out.shape == (B, out_dim)
    assert jnp.allclose(out, ref, atol=2e-4, rtol=2e-4), float(
        jnp.max(jnp.abs(out - ref)))

    # --- Test 2: unaligned shapes + small tiles -> exercises N-tiling, K-accumulation,
    #             unpadded-weight edge blocks and in-kernel K-tail masking -------------
    B2, in2, out2 = 12, 200, 130
    stdv2 = 1.0 / math.sqrt(in2)
    weight2 = jax.random.uniform(kw2, (out2, in2), jnp.float32, -stdv2, stdv2)
    bias2 = jax.random.uniform(kb2, (out2,), jnp.float32, -stdv2, stdv2)
    x2 = jax.random.normal(kx2, (B2, in2), jnp.float32)

    out2_v = jax.block_until_ready(linear_block(x2, weight2, bias2, tn=128, tk=128))
    ref2 = reference(x2, weight2, bias2)
    assert out2_v.shape == (B2, out2)
    assert jnp.allclose(out2_v, ref2, atol=2e-4, rtol=2e-4), float(
        jnp.max(jnp.abs(out2_v - ref2)))

    # --- Test 3: bf16 inputs (halved HBM traffic), bf16 output (scratch-accumulator
    #             path), aligned shapes, >=2 N tiles --------------------------------
    B3, in3, out3 = 16, 256, 256
    stdv3 = 1.0 / math.sqrt(in3)
    weight3 = jax.random.uniform(kw3, (out3, in3), jnp.float32,
                                 -stdv3, stdv3).astype(jnp.bfloat16)
    bias3 = jax.random.uniform(kb3, (out3,), jnp.float32, -stdv3, stdv3)
    x3 = jax.random.normal(kx3, (B3, in3), jnp.float32).astype(jnp.bfloat16)

    out3_v = jax.block_until_ready(
        linear_block(x3, weight3, bias3, out_dtype=jnp.bfloat16))
    ref3 = reference(x3, weight3, bias3)
    assert out3_v.shape == (B3, out3)
    assert out3_v.dtype == jnp.bfloat16
    assert jnp.allclose(out3_v.astype(jnp.float32), ref3, atol=5e-2, rtol=5e-2), float(
        jnp.max(jnp.abs(out3_v.astype(jnp.float32) - ref3)))

    print("KERNEL_OK")
</pallas_src>

<mosaic_0001>
module attributes {stable_mosaic.version = 11 : i64} {
  func.func @linear_block_kernel(%arg0: i32, %arg1: i32, %arg2: memref<8x128xf32, #tpu.memory_space<vmem>>, %arg3: memref<128x128xf32, #tpu.memory_space<vmem>>, %arg4: memref<1x128xf32, #tpu.memory_space<vmem>>, %arg5: memref<8x128xf32, #tpu.memory_space<vmem>>) attributes {dimension_semantics = [#tpu.dimension_semantics<parallel>, #tpu.dimension_semantics<arbitrary>], iteration_bounds = array<i64: 1, 1>, scalar_prefetch = 0 : i64, scratch_operands = 0 : i64, tpu.core_type = #tpu.core_type<tc>, window_params = [{pipeline_mode = #tpu.pipeline_mode<synchronous>, transform_indices = @transform_0, window_bounds = array<i64: 8, 128>}, {transform_indices = @transform_1, window_bounds = array<i64: 128, 128>}, {transform_indices = @transform_2, window_bounds = array<i64: 1, 128>}, {transform_indices = @transform_3, window_bounds = array<i64: 8, 128>}]} {
    %c128_i32 = arith.constant 128 : i32
    %0 = arith.muli %arg1, %c128_i32 : i32
    %1 = tpu.assume_multiple %0, 128 : i32
    %c0 = arith.constant 0 : index
    %2 = arith.index_cast %1 : i32 to index
    %3 = vector.load %arg2[%c0, %2] : memref<8x128xf32, #tpu.memory_space<vmem>>, vector<8x128xf32>
    %c0_0 = arith.constant 0 : index
    %c0_1 = arith.constant 0 : index
    %4 = vector.load %arg3[%c0_0, %c0_1] : memref<128x128xf32, #tpu.memory_space<vmem>>, vector<128x128xf32>
    %5 = tpu.iota {dimensions = array<i32: 1>} : vector<128x128xi32>
    %6 = vector.broadcast %1 : i32 to vector<128x128xi32>
    %7 = arith.addi %6, %5 : vector<128x128xi32>
    %c32_i32 = arith.constant 32 : i32
    %8 = vector.broadcast %c32_i32 : i32 to vector<128x128xi32>
    %9 = arith.cmpi slt, %7, %8 : vector<128x128xi32>
    %cst = arith.constant 0.000000e+00 : f32
    %10 = vector.broadcast %cst : f32 to vector<128x128xf32>
    %11 = arith.select %9, %4, %10 : vector<128x128xi1>, vector<128x128xf32>
    %cst_2 = arith.constant dense<0.000000e+00> : vector<8x128xf32>
    %12 = tpu.matmul %3, %11, %cst_2 {dimension_numbers = #tpu.dot_dimension_numbers<[1], [1], [0], [0], [0, 0, 1, 0], [], []>} : vector<8x128xf32>, vector<128x128xf32>, vector<8x128xf32> -> vector<8x128xf32>
    %c0_i32 = arith.constant 0 : i32
    %13 = arith.cmpi eq, %arg1, %c0_i32 : i32
    %14 = arith.extui %13 : i1 to i32
    %c0_i32_3 = arith.constant 0 : i32
    %15 = arith.cmpi ne, %14, %c0_i32_3 : i32
    scf.if %15 {
      %c0_8 = arith.constant 0 : index
      %c0_9 = arith.constant 0 : index
      %22 = vector.load %arg5[%c0_8, %c0_9] : memref<8x128xf32, #tpu.memory_space<vmem>>, vector<8x128xf32>
      tpu.vector_store %arg5[%c0_8, %c0_9], %12 {strides = array<i32>} : memref<8x128xf32, #tpu.memory_space<vmem>>, vector<8x128xf32>,
    } else {
    }
    %c0_i32_4 = arith.constant 0 : i32
    %16 = arith.cmpi ne, %arg1, %c0_i32_4 : i32
    %17 = arith.extui %16 : i1 to i32
    %c0_i32_5 = arith.constant 0 : i32
    %18 = arith.cmpi ne, %17, %c0_i32_5 : i32
    scf.if %18 {
      %c0_8 = arith.constant 0 : index
      %c0_9 = arith.constant 0 : index
      %22 = vector.load %arg5[%c0_8, %c0_9] : memref<8x128xf32, #tpu.memory_space<vmem>>, vector<8x128xf32>
      %23 = arith.addf %22, %12 : vector<8x128xf32>
      %c0_10 = arith.constant 0 : index
      %c0_11 = arith.constant 0 : index
      %24 = vector.load %arg5[%c0_10, %c0_11] : memref<8x128xf32, #tpu.memory_space<vmem>>, vector<8x128xf32>
      tpu.vector_store %arg5[%c0_10, %c0_11], %23 {strides = array<i32>} : memref<8x128xf32, #tpu.memory_space<vmem>>, vector<8x128xf32>,
    } else {
    }
    %c0_i32_6 = arith.constant 0 : i32
    %19 = arith.cmpi eq, %arg1, %c0_i32_6 : i32
    %20 = arith.extui %19 : i1 to i32
    %c0_i32_7 = arith.constant 0 : i32
    %21 = arith.cmpi ne, %20, %c0_i32_7 : i32
    scf.if %21 {
      %c0_8 = arith.constant 0 : index
      %c0_9 = arith.constant 0 : index
      %22 = vector.load %arg5[%c0_8, %c0_9] : memref<8x128xf32, #tpu.memory_space<vmem>>, vector<8x128xf32>
      %cst_10 = arith.constant dense<0.000000e+00> : vector<128xf32>
      %23 = vector.multi_reduction <add>, %22, %cst_10 [0] : vector<8x128xf32> to vector<128xf32>
      %24 = vector.shape_cast %23 : vector<128xf32> to vector<1x128xf32>
      %cst_11 = arith.constant 8.000000e+00 : f32
      %25 = vector.broadcast %cst_11 : f32 to vector<1x128xf32>
      %26 = arith.divf %24, %25 : vector<1x128xf32>
      %27 = vector.broadcast %26 : vector<1x128xf32> to vector<8x128xf32>
      %28 = arith.subf %22, %27 : vector<8x128xf32>
      %29 = arith.mulf %28, %28 : vector<8x128xf32>
      %cst_12 = arith.constant dense<0.000000e+00> : vector<128xf32>
      %30 = vector.multi_reduction <add>, %29, %cst_12 [0] : vector<8x128xf32> to vector<128xf32>
      %31 = vector.shape_cast %30 : vector<128xf32> to vector<1x128xf32>
      %cst_13 = arith.constant 8.000000e+00 : f32
      %32 = vector.broadcast %cst_13 : f32 to vector<1x128xf32>
      %33 = arith.divf %31, %32 : vector<1x128xf32>
      %34 = vector.broadcast %26 : vector<1x128xf32> to vector<8x128xf32>
      %35 = arith.subf %22, %34 : vector<8x128xf32>
      %cst_14 = arith.constant 9.99999974E-6 : f32
      %36 = vector.broadcast %cst_14 : f32 to vector<1x128xf32>
      %37 = arith.addf %33, %36 : vector<1x128xf32>
      %38 = math.rsqrt %37 : vector<1x128xf32>
      %39 = vector.broadcast %38 : vector<1x128xf32> to vector<8x128xf32>
      %40 = arith.mulf %35, %39 : vector<8x128xf32>
      %c0_15 = arith.constant 0 : index
      %c0_16 = arith.constant 0 : index
      %41 = vector.load %arg4[%c0_15, %c0_16] : memref<1x128xf32, #tpu.memory_space<vmem>>, vector<1x128xf32>
      %42 = vector.broadcast %41 : vector<1x128xf32> to vector<8x128xf32>
      %43 = arith.addf %40, %42 : vector<8x128xf32>
      %cst_17 = arith.constant 0.000000e+00 : f32
      %44 = vector.broadcast %cst_17 : f32 to vector<8x128xf32>
      %45 = arith.maximumf %43, %44 : vector<8x128xf32>
      %c0_18 = arith.constant 0 : index
      %c0_19 = arith.constant 0 : index
      %46 = vector.load %arg5[%c0_18, %c0_19] : memref<8x128xf32, #tpu.memory_space<vmem>>, vector<8x128xf32>
      tpu.vector_store %arg5[%c0_18, %c0_19], %45 {strides = array<i32>} : memref<8x128xf32, #tpu.memory_space<vmem>>, vector<8x128xf32>,
    } else {
    }
    return
  }
  func.func @transform_0(%arg0: i32, %arg1: i32) -> (i32, i32) {
    %c0_i32 = arith.constant 0 : i32
    %c0_i32_0 = arith.constant 0 : i32
    %c0_i32_1 = arith.constant 0 : i32
    return %c0_i32, %c0_i32_0 : i32, i32
  }
  func.func @transform_1(%arg0: i32, %arg1: i32) -> (i32, i32) {
    %c0_i32 = arith.constant 0 : i32
    return %arg0, %arg1 : i32, i32
  }
  func.func @transform_2(%arg0: i32, %arg1: i32) -> (i32, i32) {
    %c0_i32 = arith.constant 0 : i32
    %c0_i32_0 = arith.constant 0 : i32
    return %c0_i32, %arg0 : i32, i32
  }
  func.func @transform_3(%arg0: i32, %arg1: i32) -> (i32, i32) {
    %c0_i32 = arith.constant 0 : i32
    %c0_i32_0 = arith.constant 0 : i32
    return %c0_i32, %arg0 : i32, i32
  }
}

</mosaic_0001>

<llo_original>
// kernel: tpu_custom_call.1
$region0: #{tpu_custom_call.1}
  #allocation0 [shape = 'u32[]', space=smem, size = 0x4, offset = 0x4, fixed_abs, tag = 'smem constant byte address 0x4 - core index']
  #allocation1 [shape = 'u32[144,128]{1,0:T(1,128)}', space=vmem, size = 0x12000, scoped, tag = 'internal scratch']
  %s0 = inlined_call_operand.vmem [shape: f32[8,128], index: 0, kind: input, shape index: {}]
  %s1 = inlined_call_operand.vmem [shape: f32[64,32], index: 1, kind: input, shape index: {}]
  %s2 = inlined_call_operand.vmem [shape: f32[1,128], index: 2, kind: input, shape index: {}]
  %s3 = inlined_call_operand.hbm [shape: f32[8,128], index: 3, kind: output, shape index: {}]
  %s4 = sld [smem:[#allocation0]]
  $region34: #{tpu_custom_call.1} parent=0
    _
  %s6 = ssub.s32 1, %s4
  %s7 = scalar_select 0, %s6, %s4
  $region1: #{tpu_custom_call.1} parent=0
    #allocation2 [shape = 'u8[4096]{0}', space=vmem, size = 0x1000, scoped, tag = 'output window, operand 0, single buffered']
    #allocation3 [shape = 's32[1]{0}', space=sflag, size = 0x4, scoped, tag = 'scoped memory for tpu_custom_call.1']
    %8 = vsyncpa [#allocation3], 0
    // Predicated region
    $region2: #{tpu_custom_call.1} parent=1 // pred_check
      _
    $region3: #{tpu_custom_call.1} parent=1 // pred_check_branch
      %10 = sbr.rel (0) target = $region5
    $region4: #{tpu_custom_call.1} parent=1 // pred_region
      _
    $region5: #{tpu_custom_call.1} parent=1 // pred_fallthru
      _
    // Predicated region
    $region6: #{tpu_custom_call.1} parent=1 // pred_check
      _
    $region7: #{tpu_custom_call.1} parent=1 // pred_check_branch
      %12 = sbr.rel (0) target = $region9
    $region8: #{tpu_custom_call.1} parent=1 // pred_region
      _
    $region9: #{tpu_custom_call.1} parent=1 // pred_fallthru
      _
    // Predicated region
    $region10: #{tpu_custom_call.1} parent=1 // pred_check
      _
    $region11: #{tpu_custom_call.1} parent=1 // pred_check_branch
      %14 = sbr.rel (0) target = $region13
    $region12: #{tpu_custom_call.1} parent=1 // pred_region
      _
    $region13: #{tpu_custom_call.1} parent=1 // pred_fallthru
      _
    %s15 = smul.u32 0, 128
    %s16 = sshra.s32 %s15, 7
    %s17 = sand.u32 %s15, 127
    %s18 = scalar_lea.vmem %s0, %s16
    %v19 = vld [vmem:[%s18] sm:$0xff]
    %v20 = vld [vmem:[%s1] sm:$0xff]
    %v21 = vld [vmem:[%s1 + $0x8] sm:$0xff]
    %v22 = vld [vmem:[%s1 + $0x10] sm:$0xff]
    %v23 = vld [vmem:[%s1 + $0x18] sm:$0xff]
    %v24 = vld [vmem:[%s1 + $0x20] sm:$0xff]
    %v25 = vld [vmem:[%s1 + $0x28] sm:$0xff]
    %v26 = vld [vmem:[%s1 + $0x30] sm:$0xff]
    %v27 = vld [vmem:[%s1 + $0x38] sm:$0xff]
    %v28 = vld [vmem:[%s1 + $0x40] sm:$0xff]
    %v29 = vld [vmem:[%s1 + $0x48] sm:$0xff]
    %v30 = vld [vmem:[%s1 + $0x50] sm:$0xff]
    %v31 = vld [vmem:[%s1 + $0x58] sm:$0xff]
    %v32 = vld [vmem:[%s1 + $0x60] sm:$0xff]
    %v33 = vld [vmem:[%s1 + $0x68] sm:$0xff]
    %v34 = vld [vmem:[%s1 + $0x70] sm:$0xff]
    %v35 = vld [vmem:[%s1 + $0x78] sm:$0xff]
    %v36 = vlaneseq
    %v37 = vand.u32 %v36, 127
    %v38 = vstv %s15
    %v39 = vadd.s32 %v38, %v37
    %vm40 = vcmp.lt.s32.totalorder %v39, 32
    %v41 = vsel %vm40, %v20, 0.0
    %v42 = vsel %vm40, %v21, 0.0
    %v43 = vsel %vm40, %v22, 0.0
    %v44 = vsel %vm40, %v23, 0.0
    %v45 = vsel %vm40, %v24, 0.0
    %v46 = vsel %vm40, %v25, 0.0
    %v47 = vsel %vm40, %v26, 0.0
    %v48 = vsel %vm40, %v27, 0.0
    %v49 = vsel %vm40, %v28, 0.0
    %v50 = vsel %vm40, %v29, 0.0
    %v51 = vsel %vm40, %v30, 0.0
    %v52 = vsel %vm40, %v31, 0.0
    %v53 = vsel %vm40, %v32, 0.0
    %v54 = vsel %vm40, %v33, 0.0
    %v55 = vsel %vm40, %v34, 0.0
    %v56 = vsel %vm40, %v35, 0.0
    %57 = vmatprep.subr.mxu0 0.0
    %58 = vmatpush1.xpose.msra.mxu0 %v41
    %59 = vmatprep.subr.mxu0 0.0
    %60 = vmatpush1.xpose.msra.mxu0 %v42
    %61 = vmatprep.subr.mxu0 0.0
    %62 = vmatpush1.xpose.msra.mxu0 %v43
    %63 = vmatprep.subr.mxu0 0.0
    %64 = vmatpush1.xpose.msra.mxu0 %v44
    %65 = vmatprep.subr.mxu0 0.0
    %66 = vmatpush1.xpose.msra.mxu0 %v45
    %67 = vmatprep.subr.mxu0 0.0
    %68 = vmatpush1.xpose.msra.mxu0 %v46
    %69 = vmatprep.subr.mxu0 0.0
    %70 = vmatpush1.xpose.msra.mxu0 %v47
    %71 = vmatprep.subr.mxu0 0.0
    %72 = vmatpush1.xpose.msra.mxu0 %v48
    %73 = vmatprep.subr.mxu0 0.0
    %74 = vmatpush1.xpose.msra.mxu0 %v49
    %75 = vmatprep.subr.mxu0 0.0
    %76 = vmatpush1.xpose.msra.mxu0 %v50
    %77 = vmatprep.subr.mxu0 0.0
    %78 = vmatpush1.xpose.msra.mxu0 %v51
    %79 = vmatprep.subr.mxu0 0.0
    %80 = vmatpush1.xpose.msra.mxu0 %v52
    %81 = vmatprep.subr.mxu0 0.0
    %82 = vmatpush1.xpose.msra.mxu0 %v53
    %83 = vmatprep.subr.mxu0 0.0
    %84 = vmatpush1.xpose.msra.mxu0 %v54
    %85 = vmatprep.subr.mxu0 0.0
    %86 = vmatpush1.xpose.msra.mxu0 %v55
    %87 = vmatprep.subr.mxu0 0.0
    %88 = vmatpush1.xpose.msra.mxu0 %v56
    %89 = vmatprep.subr.mxu0 0.0
    %90 = vmatpush1.xpose.msra.mxu0 0.0
    %91 = vmatprep.subr.mxu0 0.0
    %92 = vmatpush1.xpose.msra.mxu0 0.0
    %93 = vmatprep.subr.mxu0 0.0
    %94 = vmatpush1.xpose.msra.mxu0 0.0
    %95 = vmatprep.subr.mxu0 0.0
    %96 = vmatpush1.xpose.msra.mxu0 0.0
    %97 = vmatprep.subr.mxu0 0.0
    %98 = vmatpush1.xpose.msra.mxu0 0.0
    %99 = vmatprep.subr.mxu0 0.0
    %100 = vmatpush1.xpose.msra.mxu0 0.0
    %101 = vmatprep.subr.mxu0 0.0
    %102 = vmatpush1.xpose.msra.mxu0 0.0
    %103 = vmatprep.subr.mxu0 0.0
    %104 = vmatpush1.xpose.msra.mxu0 0.0
    %105 = vmatprep.subr.mxu0 0.0
    %106 = vmatpush1.xpose.msra.mxu0 0.0
    %107 = vmatprep.subr.mxu0 0.0
    %108 = vmatpush1.xpose.msra.mxu0 0.0
    %109 = vmatprep.subr.mxu0 0.0
    %110 = vmatpush1.xpose.msra.mxu0 0.0
    %111 = vmatprep.subr.mxu0 0.0
    %112 = vmatpush1.xpose.msra.mxu0 0.0
    %113 = vmatprep.subr.mxu0 0.0
    %114 = vmatpush1.xpose.msra.mxu0 0.0
    %115 = vmatprep.subr.mxu0 0.0
    %116 = vmatpush1.xpose.msra.mxu0 0.0
    %117 = vmatprep.subr.mxu0 0.0
    %118 = vmatpush1.xpose.msra.mxu0 0.0
    %119 = vmatprep.subr.mxu0 0.0
    %120 = vmatpush1.xpose.msra.mxu0 0.0
    %121 = vmatprep.mubr.f32.mxu0 0.0
    %122 = vmatmul.mubr.f32.gmra.mrb[0].mxu0 %v19
    %v123 = vpop.f32.mrb[0].mxu0
    %v124 = vadd.f32 0.0, %v123
    %v125 = vpop.f32.mrb[0].mxu0
    %126 = vdwg.mxu0
    %p127 = scmp.eq.s32.totalorder 0, 0
    // Predicated region
    $region14: #{tpu_custom_call.1} parent=1 // pred_check
      %p128 = pneg %p127
    $region15: #{tpu_custom_call.1} parent=1 // pred_check_branch
      %130 = sbr.rel (%p128) target = $region17
    $region16: #{tpu_custom_call.1} parent=1 // pred_region
      %131 = vst [vmem:[#allocation2] sm:$0xff] %v124
    $region17: #{tpu_custom_call.1} parent=1 // pred_fallthru
      _
    %p132 = scmp.ne.s32.totalorder 0, 0
    // Predicated region
    $region18: #{tpu_custom_call.1} parent=1 // pred_check
      %p133 = pneg %p132
    $region19: #{tpu_custom_call.1} parent=1 // pred_check_branch
      %135 = sbr.rel (%p133) target = $region21
    $region20: #{tpu_custom_call.1} parent=1 // pred_region
      %v136 = vld [vmem:[#allocation2] sm:$0xff]
      %v137 = vadd.f32 %v136, %v124
      %138 = vst [vmem:[#allocation2] sm:$0xff] %v137
    $region21: #{tpu_custom_call.1} parent=1 // pred_fallthru
      _
    // Predicated region
    $region22: #{tpu_custom_call.1} parent=1 // pred_check
      %p139 = pneg %p127
    $region23: #{tpu_custom_call.1} parent=1 // pred_check_branch
      %141 = sbr.rel (%p139) target = $region25
    $region24: #{tpu_custom_call.1} parent=1 // pred_region
      %v142 = vld [vmem:[#allocation2] sm:$0xff]
      %v143 = vrot.slane %v142, 4
      %v144 = vadd.f32 %v142, %v143
      %v145 = vrot.slane %v144, 2
      %v146 = vadd.f32 %v144, %v145
      %v147 = vrot.slane %v146, 1
      %v148 = vadd.f32 %v146, %v147
      %v149 = vrcp.pop 8.0
      %v150 = vmul.f32 %v148, %v149
      %v151 = vsub.f32 %v142, %v150
      %v152 = vmul.f32 %v151, %v151
      %v153 = vrot.slane %v152, 4
      %v154 = vadd.f32 %v152, %v153
      %v155 = vrot.slane %v154, 2
      %v156 = vadd.f32 %v154, %v155
      %v157 = vrot.slane %v156, 1
      %v158 = vadd.f32 %v156, %v157
      %v159 = vmul.f32 %v158, %v149
      %v160 = vadd.f32 %v159, 1e-05
      %v161 = vrsqrt.pop %v160
      %v162 = vmul.f32 %v151, %v161
      %v163 = vld [vmem:[%s2] sm:$0x1]
      %v165 = vlaneseq
      %v166 = vshrl.u32 %v165, 7
      %v167 = vsub.s32 0, %v166
      %v168 = vrot.slane %v163, %v167
      %v170 = vadd.f32 %v162, %v168
      %v171 = vmax.f32 %v170, 0.0
      %172 = vst [vmem:[#allocation2] sm:$0xff] %v171
    $region25: #{tpu_custom_call.1} parent=1 // pred_fallthru
      _
    // Predicated region
    $region26: #{tpu_custom_call.1} parent=1 // pred_check
      _
    $region27: #{tpu_custom_call.1} parent=1 // pred_check_branch
      %174 = sbr.rel (0) target = $region29
    $region28: #{tpu_custom_call.1} parent=1 // pred_region
      %s176 = ssub.s32 128, 128
      %177 = vsyncadd [#allocation3], %s176
      %s179 = sshll.u32 [#allocation2], 4
      %s180 = int_to_ptr.vmem [resolvable:$true] %s179
      %182 = dma.vmem_to_hbm [thread:$0]  %s180, 128, %s3, [#allocation3]
    $region29: #{tpu_custom_call.1} parent=1 // pred_fallthru
      _
    // Predicated region
    $region30: #{tpu_custom_call.1} parent=1 // pred_check
      _
    $region31: #{tpu_custom_call.1} parent=1 // pred_check_branch
      %184 = sbr.rel (0) target = $region33
    $region32: #{tpu_custom_call.1} parent=1 // pred_region
      %185 = dma.done [#allocation3], 128
    $region33: #{tpu_custom_call.1} parent=1 // pred_fallthru
      _
    %186 = vsyncpa [#allocation3], 1

</llo_original>
